<compile_context>
chip_gen: v5e
topology: v5e:2x2
jax: 0.10.0
libtpu: 0.0.40
codegen_flags: <defaults>
</compile_context>

<pallas_src>
import jax
import jax.numpy as jnp
from jax.experimental import pallas as pl
from jax.experimental.pallas import tpu as pltpu


def _head_kernel(x_ref, w1_ref, b1_ref, w2_ref, b2_ref, o_ref):
    # x_ref:  (tb, H)     CLS-token activations (bf16)
    # w1_ref: (H, H)      dense weight, (in, out) = MXU-native (K, N), VMEM-resident
    # b1_ref: (1, H)      dense bias, f32
    # w2_ref: (H, Lp)     out_proj weight, (in, out), zero-padded columns
    # b2_ref: (1, Lp)     out_proj bias, f32, zero-padded
    # o_ref:  (tb, Lp)    logits (padded label columns are exactly zero)
    x = x_ref[...]
    h = jnp.dot(x, w1_ref[...], preferred_element_type=jnp.float32)
    h = jnp.tanh(h + b1_ref[...])                       # bias add + tanh in f32
    out = jnp.dot(h.astype(w2_ref.dtype), w2_ref[...],
                  preferred_element_type=jnp.float32)
    o_ref[...] = (out + b2_ref[...]).astype(o_ref.dtype)


def prepare_head_params(dense_w, dense_b, out_w, out_b,
                        param_dtype=jnp.bfloat16):
    """One-time ("model init") parameter preparation.

    Transposes the PyTorch (out, in) weights once to the MXU-native (K, N)
    layout, casts them to `param_dtype` (bf16 halves the bandwidth-bound
    weight bytes), and zero-pads out_proj to a lane-dense multiple of 128
    labels so the final store is an unmasked full-lane vst.  Biases stay f32.
    """
    H = dense_w.shape[1]
    L = out_w.shape[0]
    L_pad = max(128, ((L + 127) // 128) * 128)
    w1 = dense_w.T.astype(param_dtype)                          # (H_in, H_out)
    b1 = dense_b.astype(jnp.float32).reshape(1, H)              # (1, H)
    w2 = (jnp.zeros((H, L_pad), param_dtype)
          .at[:, :L].set(out_w.T.astype(param_dtype)))          # (H, L_pad)
    b2 = jnp.zeros((1, L_pad), jnp.float32).at[0, :L].set(out_b.astype(jnp.float32))
    return dict(w1=w1, b1=b1, w2=w2, b2=b2, num_labels=L)


def roberta_classification_head(features, params, *, batch_tile=512):
    """features: [B, S, H]; params: output of prepare_head_params.
    Returns logits [B, num_labels] in features.dtype."""
    B, S, H = features.shape
    w1, b1, w2, b2 = params["w1"], params["b1"], params["w2"], params["b2"]
    L = params["num_labels"]
    L_pad = w2.shape[1]

    # CLS-token slice fused with the activation cast: one strided (B, H) copy.
    x = features[:, 0, :].astype(w1.dtype)

    # Batch tiling (see header comment). tb is either the full (tiny) batch or
    # a multiple of 8, so the (8, 128) block-shape rule is always satisfied;
    # a ragged last tile is handled by Pallas (masked store, padded reads).
    if B <= 16:
        tb = B
    elif B <= batch_tile:
        tb = ((pl.cdiv(B, 2) + 7) // 8) * 8          # >= 2 grid steps
    else:
        tb = batch_tile
    grid = (pl.cdiv(B, tb),)

    cost = pl.CostEstimate(
        flops=2 * B * H * (H + L_pad),
        transcendentals=B * H,
        # Weights/biases counted once (per-core duplication on a sharded v7x
        # grid can double the weight bytes; this is a scheduling hint only).
        bytes_accessed=(x.size * x.dtype.itemsize
                        + w1.size * w1.dtype.itemsize
                        + b1.size * b1.dtype.itemsize
                        + w2.size * w2.dtype.itemsize
                        + b2.size * b2.dtype.itemsize
                        + B * L_pad * features.dtype.itemsize),
    )

    grid_spec = pltpu.PrefetchScalarGridSpec(
        num_scalar_prefetch=0,
        grid=grid,
        in_specs=[
            pl.BlockSpec((tb, H), lambda i: (i, 0)),      # x: tiled over batch
            pl.BlockSpec((H, H), lambda i: (0, 0)),       # w1: VMEM-resident
            pl.BlockSpec((1, H), lambda i: (0, 0)),       # b1
            pl.BlockSpec((H, L_pad), lambda i: (0, 0)),   # w2: VMEM-resident
            pl.BlockSpec((1, L_pad), lambda i: (0, 0)),   # b2
        ],
        out_specs=pl.BlockSpec((tb, L_pad), lambda i: (i, 0)),
    )

    logits_padded = pl.pallas_call(
        _head_kernel,
        out_shape=jax.ShapeDtypeStruct((B, L_pad), features.dtype),
        grid_spec=grid_spec,
        compiler_params=pltpu.CompilerParams(
            dimension_semantics=("parallel",)),
        cost_estimate=cost,
    )(x, w1, b1, w2, b2)

    return logits_padded[:, :L]


if __name__ == "__main__":
    # Small config: batch=2, seq=8, hidden=32, num_labels=4.
    B, S, H, L = 2, 8, 32, 4

    key = jax.random.PRNGKey(0)
    k_feat, k_w1, k_b1, k_w2, k_b2 = jax.random.split(key, 5)

    features = jax.random.normal(k_feat, (B, S, H), dtype=jnp.float32)
    dense_w = jax.random.normal(k_w1, (H, H), dtype=jnp.float32) * 0.02
    dense_b = jax.random.normal(k_b1, (H,), dtype=jnp.float32) * 0.02
    out_w = jax.random.normal(k_w2, (L, H), dtype=jnp.float32) * 0.02
    out_b = jax.random.normal(k_b2, (L,), dtype=jnp.float32) * 0.02

    # One-time parameter prep (bf16 weights, MXU-native (K, N) layout, padded L).
    params = prepare_head_params(dense_w, dense_b, out_w, out_b,
                                 param_dtype=jnp.bfloat16)

    logits = roberta_classification_head(features, params)
    logits = jax.block_until_ready(logits)

    # Reference using the same bf16-prepared weights (kernel-consistent math,
    # f32 accumulation / bias / tanh).  Note: this validates against the
    # bf16-cast weights, not full f32 PyTorch parity.
    xb = features[:, 0, :].astype(jnp.bfloat16).astype(jnp.float32)
    w1f = params["w1"].astype(jnp.float32)                 # (H_in, H_out)
    w2f = params["w2"][:, :L].astype(jnp.float32)          # (H, L)
    h = jnp.tanh(xb @ w1f + dense_b)
    ref = h.astype(jnp.bfloat16).astype(jnp.float32) @ w2f + out_b

    assert logits.shape == (B, L)
    assert jnp.allclose(logits, ref, atol=1e-4, rtol=1e-3), (
        float(jnp.max(jnp.abs(logits - ref))))

    print("KERNEL_OK")
</pallas_src>

<mosaic_0001>
module attributes {stable_mosaic.version = 11 : i64} {
  func.func @_head_kernel(%arg0: i32, %arg1: memref<2x32xbf16, #tpu.memory_space<vmem>>, %arg2: memref<32x32xbf16, #tpu.memory_space<vmem>>, %arg3: memref<1x32xf32, #tpu.memory_space<vmem>>, %arg4: memref<32x128xbf16, #tpu.memory_space<vmem>>, %arg5: memref<1x128xf32, #tpu.memory_space<vmem>>, %arg6: memref<2x128xf32, #tpu.memory_space<vmem>>) attributes {dimension_semantics = [#tpu.dimension_semantics<parallel>], iteration_bounds = array<i64: 1>, scalar_prefetch = 0 : i64, scratch_operands = 0 : i64, tpu.core_type = #tpu.core_type<tc>, window_params = [{transform_indices = @transform_0, window_bounds = array<i64: 2, 32>}, {pipeline_mode = #tpu.pipeline_mode<synchronous>, transform_indices = @transform_1, window_bounds = array<i64: 32, 32>}, {pipeline_mode = #tpu.pipeline_mode<synchronous>, transform_indices = @transform_2, window_bounds = array<i64: 1, 32>}, {pipeline_mode = #tpu.pipeline_mode<synchronous>, transform_indices = @transform_3, window_bounds = array<i64: 32, 128>}, {pipeline_mode = #tpu.pipeline_mode<synchronous>, transform_indices = @transform_4, window_bounds = array<i64: 1, 128>}, {transform_indices = @transform_5, window_bounds = array<i64: 2, 128>}]} {
    %c0 = arith.constant 0 : index
    %c0_0 = arith.constant 0 : index
    %0 = vector.load %arg1[%c0, %c0_0] : memref<2x32xbf16, #tpu.memory_space<vmem>>, vector<2x32xbf16>
    %c0_1 = arith.constant 0 : index
    %c0_2 = arith.constant 0 : index
    %1 = vector.load %arg2[%c0_1, %c0_2] : memref<32x32xbf16, #tpu.memory_space<vmem>>, vector<32x32xbf16>
    %cst = arith.constant dense<0.000000e+00> : vector<2x32xf32>
    %2 = tpu.matmul %0, %1, %cst {dimension_numbers = #tpu.dot_dimension_numbers<[1], [0], [0], [1], [0, 0, 1, 1], [], []>} : vector<2x32xbf16>, vector<32x32xbf16>, vector<2x32xf32> -> vector<2x32xf32>
    %c0_3 = arith.constant 0 : index
    %c0_4 = arith.constant 0 : index
    %3 = vector.load %arg3[%c0_3, %c0_4] : memref<1x32xf32, #tpu.memory_space<vmem>>, vector<1x32xf32>
    %4 = vector.broadcast %3 : vector<1x32xf32> to vector<2x32xf32>
    %5 = arith.addf %2, %4 : vector<2x32xf32>
    %6 = math.tanh %5 : vector<2x32xf32>
    %7 = arith.truncf %6 : vector<2x32xf32> to vector<2x32xbf16>
    %c0_5 = arith.constant 0 : index
    %c0_6 = arith.constant 0 : index
    %8 = vector.load %arg4[%c0_5, %c0_6] : memref<32x128xbf16, #tpu.memory_space<vmem>>, vector<32x128xbf16>
    %cst_7 = arith.constant dense<0.000000e+00> : vector<2x128xf32>
    %9 = tpu.matmul %7, %8, %cst_7 {dimension_numbers = #tpu.dot_dimension_numbers<[1], [0], [0], [1], [0, 0, 1, 1], [], []>} : vector<2x32xbf16>, vector<32x128xbf16>, vector<2x128xf32> -> vector<2x128xf32>
    %c0_8 = arith.constant 0 : index
    %c0_9 = arith.constant 0 : index
    %10 = vector.load %arg5[%c0_8, %c0_9] : memref<1x128xf32, #tpu.memory_space<vmem>>, vector<1x128xf32>
    %11 = vector.broadcast %10 : vector<1x128xf32> to vector<2x128xf32>
    %12 = arith.addf %9, %11 : vector<2x128xf32>
    %c0_10 = arith.constant 0 : index
    %c0_11 = arith.constant 0 : index
    %13 = vector.load %arg6[%c0_10, %c0_11] : memref<2x128xf32, #tpu.memory_space<vmem>>, vector<2x128xf32>
    tpu.vector_store %arg6[%c0_10, %c0_11], %12 {strides = array<i32>} : memref<2x128xf32, #tpu.memory_space<vmem>>, vector<2x128xf32>,
    return
  }
  func.func @transform_0(%arg0: i32) -> (i32, i32) {
    %c0_i32 = arith.constant 0 : i32
    %c0_i32_0 = arith.constant 0 : i32
    return %arg0, %c0_i32 : i32, i32
  }
  func.func @transform_1(%arg0: i32) -> (i32, i32) {
    %c0_i32 = arith.constant 0 : i32
    %c0_i32_0 = arith.constant 0 : i32
    %c0_i32_1 = arith.constant 0 : i32
    return %c0_i32, %c0_i32_0 : i32, i32
  }
  func.func @transform_2(%arg0: i32) -> (i32, i32) {
    %c0_i32 = arith.constant 0 : i32
    %c0_i32_0 = arith.constant 0 : i32
    %c0_i32_1 = arith.constant 0 : i32
    return %c0_i32, %c0_i32_0 : i32, i32
  }
  func.func @transform_3(%arg0: i32) -> (i32, i32) {
    %c0_i32 = arith.constant 0 : i32
    %c0_i32_0 = arith.constant 0 : i32
    %c0_i32_1 = arith.constant 0 : i32
    return %c0_i32, %c0_i32_0 : i32, i32
  }
  func.func @transform_4(%arg0: i32) -> (i32, i32) {
    %c0_i32 = arith.constant 0 : i32
    %c0_i32_0 = arith.constant 0 : i32
    %c0_i32_1 = arith.constant 0 : i32
    return %c0_i32, %c0_i32_0 : i32, i32
  }
  func.func @transform_5(%arg0: i32) -> (i32, i32) {
    %c0_i32 = arith.constant 0 : i32
    %c0_i32_0 = arith.constant 0 : i32
    return %arg0, %c0_i32 : i32, i32
  }
}

</mosaic_0001>

<llo_original>
// kernel: tpu_custom_call.1
$region0: #{tpu_custom_call.1}
  #allocation0 [shape = 'u32[]', space=smem, size = 0x4, offset = 0x4, fixed_abs, tag = 'smem constant byte address 0x4 - core index']
  #allocation1 [shape = 'u32[72,128]{1,0:T(1,128)}', space=vmem, size = 0x9000, scoped, tag = 'internal scratch']
  %s0 = inlined_call_operand.hbm [shape: bf16[2,32], index: 0, kind: input, shape index: {}]
  %s1 = inlined_call_operand.hbm [shape: bf16[32,32], index: 1, kind: input, shape index: {}]
  %s2 = inlined_call_operand.vmem [shape: f32[1,32], index: 2, kind: input, shape index: {}]
  %s3 = inlined_call_operand.hbm [shape: bf16[32,128], index: 3, kind: input, shape index: {}]
  %s4 = inlined_call_operand.vmem [shape: f32[1,128], index: 4, kind: input, shape index: {}]
  %s5 = inlined_call_operand.hbm [shape: f32[2,128], index: 5, kind: output, shape index: {}]
  %s6 = sld [smem:[#allocation0]]
  $region42: #{tpu_custom_call.1} parent=0
    _
  %s8 = ssub.s32 1, %s6
  %s9 = scalar_select 0, %s8, %s6
  $region1: #{tpu_custom_call.1} parent=0
    #allocation2 [shape = 'u8[512]{0}', space=vmem, size = 0x400, scoped, tag = 'input window, operand 0, single buffered']
    #allocation3 [shape = 's32[1]{0}', space=sflag, size = 0x4, scoped, tag = 'scoped memory for tpu_custom_call.1']
    #allocation4 [shape = 's32[1]{0}', space=sflag, size = 0x4, scoped, tag = 'scoped memory for tpu_custom_call.1']
    #allocation5 [shape = 'u8[8192]{0}', space=vmem, size = 0x2000, scoped, tag = 'input window, operand 1, single buffered']
    #allocation6 [shape = 's32[1]{0}', space=sflag, size = 0x4, scoped, tag = 'scoped memory for tpu_custom_call.1']
    #allocation7 [shape = 'u8[8192]{0}', space=vmem, size = 0x2000, scoped, tag = 'input window, operand 3, single buffered']
    #allocation8 [shape = 'u8[1024]{0}', space=vmem, size = 0x400, scoped, tag = 'output window, operand 0, single buffered']
    %10 = vsyncpa [#allocation3], 0
    %11 = vsyncpa [#allocation6], 0
    %12 = vsyncpa [#allocation4], 0
    // Predicated region
    $region2: #{tpu_custom_call.1} parent=1 // pred_check
      _
    $region3: #{tpu_custom_call.1} parent=1 // pred_check_branch
      %14 = sbr.rel (0) target = $region5
    $region4: #{tpu_custom_call.1} parent=1 // pred_region
      %16 = vsyncadd [#allocation3], 0
      %s18 = sshll.u32 %s0, 4
      %s19 = int_to_ptr.hbm [resolvable:$true] %s18
      %s20 = sshll.u32 [#allocation2], 4
      %s21 = int_to_ptr.vmem [resolvable:$true] %s20
      %23 = dma.hbm_to_vmem [thread:$0]  %s19, 16, %s21, [#allocation3]
    $region5: #{tpu_custom_call.1} parent=1 // pred_fallthru
      _
    // Predicated region
    $region6: #{tpu_custom_call.1} parent=1 // pred_check
      _
    $region7: #{tpu_custom_call.1} parent=1 // pred_check_branch
      %25 = sbr.rel (0) target = $region9
    $region8: #{tpu_custom_call.1} parent=1 // pred_region
      %27 = vsyncadd [#allocation6], 0
      %s28 = sshll.u32 %s1, 4
      %s29 = int_to_ptr.hbm [resolvable:$true] %s28
      %s30 = sshll.u32 [#allocation5], 4
      %s31 = int_to_ptr.vmem [resolvable:$true] %s30
      %36 = dma.hbm_to_vmem [thread:$0]  %s29, 256, %s31, [#allocation6], 64, 64, 4
    $region9: #{tpu_custom_call.1} parent=1 // pred_fallthru
      _
    // Predicated region
    $region10: #{tpu_custom_call.1} parent=1 // pred_check
      _
    $region11: #{tpu_custom_call.1} parent=1 // pred_check_branch
      %38 = sbr.rel (0) target = $region13
    $region12: #{tpu_custom_call.1} parent=1 // pred_region
      _
    $region13: #{tpu_custom_call.1} parent=1 // pred_fallthru
      _
    // Predicated region
    $region14: #{tpu_custom_call.1} parent=1 // pred_check
      _
    $region15: #{tpu_custom_call.1} parent=1 // pred_check_branch
      %40 = sbr.rel (0) target = $region17
    $region16: #{tpu_custom_call.1} parent=1 // pred_region
      %42 = vsyncadd [#allocation6], 0
      %s43 = sshll.u32 %s3, 4
      %s44 = int_to_ptr.hbm [resolvable:$true] %s43
      %s45 = sshll.u32 [#allocation7], 4
      %s46 = int_to_ptr.vmem [resolvable:$true] %s45
      %51 = dma.hbm_to_vmem [thread:$0]  %s44, 256, %s46, [#allocation6], 64, 64, 4
    $region17: #{tpu_custom_call.1} parent=1 // pred_fallthru
      _
    // Predicated region
    $region18: #{tpu_custom_call.1} parent=1 // pred_check
      _
    $region19: #{tpu_custom_call.1} parent=1 // pred_check_branch
      %53 = sbr.rel (0) target = $region21
    $region20: #{tpu_custom_call.1} parent=1 // pred_region
      _
    $region21: #{tpu_custom_call.1} parent=1 // pred_fallthru
      _
    // Predicated region
    $region22: #{tpu_custom_call.1} parent=1 // pred_check
      _
    $region23: #{tpu_custom_call.1} parent=1 // pred_check_branch
      %55 = sbr.rel (0) target = $region25
    $region24: #{tpu_custom_call.1} parent=1 // pred_region
      %57 = dma.done [#allocation3], 16
    $region25: #{tpu_custom_call.1} parent=1 // pred_fallthru
      _
    // Predicated region
    $region26: #{tpu_custom_call.1} parent=1 // pred_check
      _
    $region27: #{tpu_custom_call.1} parent=1 // pred_check_branch
      %59 = sbr.rel (0) target = $region29
    $region28: #{tpu_custom_call.1} parent=1 // pred_region
      %61 = dma.done [#allocation6], 256
    $region29: #{tpu_custom_call.1} parent=1 // pred_fallthru
      _
    // Predicated region
    $region30: #{tpu_custom_call.1} parent=1 // pred_check
      _
    $region31: #{tpu_custom_call.1} parent=1 // pred_check_branch
      %63 = sbr.rel (0) target = $region33
    $region32: #{tpu_custom_call.1} parent=1 // pred_region
      %65 = dma.done [#allocation6], 256
    $region33: #{tpu_custom_call.1} parent=1 // pred_fallthru
      _
    %v67 = vld [vmem:[#allocation2] sm:$0x1]
    %v68 = vld [vmem:[#allocation5] sm:$0xf]
    %v69 = vld [vmem:[#allocation5 + $0x4] sm:$0xf]
    %v70 = vld [vmem:[#allocation5 + $0x8] sm:$0xf]
    %v71 = vld [vmem:[#allocation5 + $0xc] sm:$0xf]
    %v72 = vld [vmem:[%s2] sm:$0x1]
    %v74 = vperm.slane %v72, 0
    %v80 = vunpack.c.l.b16 %v68
    %v81 = vunpack.c.l.b16 %v69
    %v82 = vunpack.c.l.b16 %v70
    %v83 = vunpack.c.l.b16 %v71
    %v84 = vpack.c.b16 %v81, %v80
    %v85 = vpack.c.b16 %v83, %v82
    %vm88 = vcmask 261120
    %v90 = vsel %vm88, %v67, 0
    %92 = vmatpush.bf16.msra.mxu0 0
    %93 = vmatpush.bf16.msra.mxu0 0
    %94 = vmatpush.bf16.msra.mxu0 0
    %95 = vmatpush.bf16.msra.mxu0 0
    %96 = vmatpush.bf16.msra.mxu0 0
    %97 = vmatpush.bf16.msra.mxu0 0
    %98 = vmatpush.bf16.msra.mxu0 %v85
    %99 = vmatpush.bf16.msra.mxu0 %v84
    %100 = vmatmul.bf16.gmra.mxu0 %v90
    %v101 = vpop.f32.mrf.mxu0
    %v102 = vadd.f32 %v74, %v101
    %v103 = vpop.f32.mrf.mxu0
    %104 = vdwg.mxu0
    %v105 = vtanh.pop %v102
    %v106 = vpack.c.bf16 %v105, %v105
    %v107 = vld [vmem:[#allocation7] sm:$0xf]
    %v108 = vld [vmem:[#allocation7 + $0x4] sm:$0xf]
    %v109 = vld [vmem:[#allocation7 + $0x8] sm:$0xf]
    %v110 = vld [vmem:[#allocation7 + $0xc] sm:$0xf]
    %v111 = vld [vmem:[%s4] sm:$0x1]
    %v113 = vperm.slane %v111, 0
    %v119 = vunpack.c.l.b16 %v107
    %v120 = vunpack.c.l.b16 %v108
    %v121 = vunpack.c.l.b16 %v109
    %v122 = vunpack.c.l.b16 %v110
    %v123 = vpack.c.b16 %v120, %v119
    %v124 = vpack.c.b16 %v122, %v121
    %v128 = vsel %vm88, %v106, 0
    %130 = vmatpush.bf16.msra.mxu0 0
    %131 = vmatpush.bf16.msra.mxu0 0
    %132 = vmatpush.bf16.msra.mxu0 0
    %133 = vmatpush.bf16.msra.mxu0 0
    %134 = vmatpush.bf16.msra.mxu0 0
    %135 = vmatpush.bf16.msra.mxu0 0
    %136 = vmatpush.bf16.msra.mxu0 %v124
    %137 = vmatpush.bf16.msra.mxu0 %v123
    %138 = vmatmul.bf16.gmra.mxu0 %v128
    %v139 = vpop.f32.mrf.mxu0
    %v140 = vadd.f32 %v113, %v139
    %v141 = vpop.f32.mrf.mxu0
    %142 = vdwg.mxu0
    %143 = vst [vmem:[#allocation8] sm:$0x3] %v140
    // Predicated region
    $region34: #{tpu_custom_call.1} parent=1 // pred_check
      _
    $region35: #{tpu_custom_call.1} parent=1 // pred_check_branch
      %145 = sbr.rel (0) target = $region37
    $region36: #{tpu_custom_call.1} parent=1 // pred_region
      %147 = vsyncadd [#allocation4], 0
      %s149 = sshll.u32 [#allocation8], 4
      %s150 = int_to_ptr.vmem [resolvable:$true] %s149
      %s151 = sshll.u32 %s5, 4
      %s152 = int_to_ptr.hbm [resolvable:$true] %s151
      %154 = dma.vmem_to_hbm [thread:$0]  %s150, 32, %s152, [#allocation4]
    $region37: #{tpu_custom_call.1} parent=1 // pred_fallthru
      _
    // Predicated region
    $region38: #{tpu_custom_call.1} parent=1 // pred_check
      _
    $region39: #{tpu_custom_call.1} parent=1 // pred_check_branch
      %156 = sbr.rel (0) target = $region41
    $region40: #{tpu_custom_call.1} parent=1 // pred_region
      %158 = dma.done [#allocation4], 32
    $region41: #{tpu_custom_call.1} parent=1 // pred_fallthru
      _
    %159 = vsyncpa [#allocation3], 1
    %160 = vsyncpa [#allocation6], 1
    %161 = vsyncpa [#allocation4], 1

</llo_original>
